<compile_context>
chip_gen: v7x
topology: tpu7x:2x2x1
jax: 0.10.0
libtpu: 0.0.40
codegen_flags: <defaults>
</compile_context>

<pallas_src>
import functools

import jax
import jax.numpy as jnp
from jax import lax
from jax.experimental import pallas as pl
from jax.experimental.pallas import tpu as pltpu

_MIB = 1024 * 1024


def _device_kind():
    try:
        return jax.devices()[0].device_kind.lower()
    except Exception:
        return ""


def _pick_tile(n, cap):
    """Largest tile <= cap that divides n and keeps sublane (8) alignment."""
    if n <= cap:
        return n
    start = cap - (cap % 8)
    for t in range(start, 7, -8):
        if n % t == 0:
            return t
    return n  # full extent is always a legal block


def _round_up(x, m):
    return ((x + m - 1) // m) * m


def _vmem_limit(bytes_needed):
    # Request the real footprint plus slack for Mosaic-internal temporaries;
    # never ask for a fixed "all of physical VMEM" number (v7x has only 64 MiB).
    return int(min(100 * _MIB, bytes_needed + max(bytes_needed // 2, 8 * _MIB)))


def _pad_head_cols(w, num_heads, hd, hd_pad):
    """(C_in, H*hd) -> (C_in, H*hd_pad); each head's columns land in a 128-lane slot."""
    if hd_pad == hd:
        return w
    c_in = w.shape[0]
    w = w.reshape(c_in, num_heads, hd)
    w = jnp.pad(w, ((0, 0), (0, 0), (0, hd_pad - hd)))
    return w.reshape(c_in, num_heads * hd_pad)


def _pad_head_rows(w, num_heads, hd, hd_pad):
    """(H*hd, C_out) -> (H*hd_pad, C_out); zero rows under the padded lanes."""
    if hd_pad == hd:
        return w
    c_out = w.shape[1]
    w = w.reshape(num_heads, hd, c_out)
    w = jnp.pad(w, ((0, 0), (0, hd_pad - hd), (0, 0)))
    return w.reshape(num_heads * hd_pad, c_out)


# ---------------------------------------------------------------------------
# Kernel 1: generic linear projection into the (padded-head) bf16 layout.
# ---------------------------------------------------------------------------
def _proj_kernel(x_ref, w_ref, o_ref):
    o_ref[0] = jnp.dot(x_ref[0].astype(jnp.bfloat16), w_ref[...],
                       preferred_element_type=jnp.float32).astype(o_ref.dtype)


def _project(x, w_bf16, tile_cap):
    """y[b, n, :] = x[b, n, :] @ w ; bf16 output in padded-head column layout."""
    B, N, C = x.shape
    Cp = w_bf16.shape[1]
    t = _pick_tile(N, tile_cap)
    itemsize = jnp.dtype(x.dtype).itemsize
    footprint = (2 * t * C * itemsize      # input block, double-buffered
                 + C * Cp * 2              # weight, single buffer (Buffered(1))
                 + 2 * t * Cp * 2          # output block, double-buffered
                 + t * Cp * 4)             # f32 matmul result before the cast
    cost = pl.CostEstimate(
        flops=2 * B * N * C * Cp,
        transcendentals=0,
        bytes_accessed=B * N * C * itemsize + C * Cp * 2 + B * N * Cp * 2)
    return pl.pallas_call(
        _proj_kernel,
        out_shape=jax.ShapeDtypeStruct((B, N, Cp), jnp.bfloat16),
        grid_spec=pltpu.PrefetchScalarGridSpec(
            num_scalar_prefetch=0,
            grid=(B, N // t),
            in_specs=[pl.BlockSpec((1, t, C), lambda b, i: (b, i, 0)),
                      pl.BlockSpec((C, Cp), lambda b, i: (0, 0),
                                   pipeline_mode=pl.Buffered(1))],
            out_specs=pl.BlockSpec((1, t, Cp), lambda b, i: (b, i, 0)),
        ),
        compiler_params=pltpu.CompilerParams(
            dimension_semantics=("parallel", "parallel"),
            vmem_limit_bytes=_vmem_limit(footprint)),
        cost_estimate=cost,
    )(x, w_bf16)


# ---------------------------------------------------------------------------
# Kernel 2: flash attention (online softmax over Nk tiles) + fused output
#           projection (+ bias).
# ---------------------------------------------------------------------------
def _flash_attn_kernel(q_ref, k_ref, v_ref, wo_ref, bo_ref, o_ref,
                       m_sc, l_sc, acc_sc, *, num_heads, hd_pad, bf16_exp):
    ki = pl.program_id(2)

    @pl.when(ki == 0)
    def _init():
        m_sc[...] = jnp.full_like(m_sc, -jnp.inf)
        l_sc[...] = jnp.zeros_like(l_sc)
        acc_sc[...] = jnp.zeros_like(acc_sc)

    # Static (unrolled) per-head loop over 128-lane-aligned slots of the padded
    # layout.  Operands are ref slices (not full-tile values) so each matmul
    # streams straight from the pipelined VMEM buffer -> low vreg pressure.
    for h in range(num_heads):
        sl = slice(h * hd_pad, (h + 1) * hd_pad)
        qh = q_ref[0, :, sl]                      # (tq, hd_pad) bf16
        kh = k_ref[0, :, sl]                      # (tk, hd_pad) bf16

        # scores = qh @ kh^T (scale already folded into Wq; pad lanes are zero)
        s = lax.dot_general(qh, kh, (((1,), (1,)), ((), ())),
                            preferred_element_type=jnp.float32)   # (tq, tk) f32

        m_prev = m_sc[:, h:h + 1]
        l_prev = l_sc[:, h:h + 1]
        m_new = jnp.maximum(m_prev, jnp.max(s, axis=-1, keepdims=True))
        alpha = jnp.exp(m_prev - m_new)                            # f32 EUP

        if bf16_exp:
            # v6e/v7x: bf16 EUP exp ~2x throughput; p feeds the MXU directly.
            p = jnp.exp((s - m_new).astype(jnp.bfloat16))
            row_sum = jnp.sum(p.astype(jnp.float32), axis=-1, keepdims=True)
        else:
            # v5e: no bf16 EUP path -> keep f32 exp.
            p_f32 = jnp.exp(s - m_new)
            row_sum = jnp.sum(p_f32, axis=-1, keepdims=True)
            p = p_f32.astype(jnp.bfloat16)

        l_sc[:, h:h + 1] = alpha * l_prev + row_sum
        m_sc[:, h:h + 1] = m_new
        acc_sc[:, sl] = alpha * acc_sc[:, sl] + jnp.dot(
            p, v_ref[0, :, sl], preferred_element_type=jnp.float32)

    @pl.when(ki == pl.num_programs(2) - 1)
    def _finalize():
        for h in range(num_heads):
            sl = slice(h * hd_pad, (h + 1) * hd_pad)
            inv_l = pl.reciprocal(l_sc[:, h:h + 1], approx=True)
            acc_sc[:, sl] = acc_sc[:, sl] * inv_l
        y = jnp.dot(acc_sc[...].astype(jnp.bfloat16), wo_ref[...],
                    preferred_element_type=jnp.float32) + bo_ref[...]
        o_ref[0] = y.astype(o_ref.dtype)


def cross_attention_pallas(query, key, value, params, *, num_heads,
                           q_tile=None, kv_tile=None,
                           kv_buffers=None, bf16_exp=None):
    """query: (B, Nq, C), key: (B, Nk, C), value: (B, Nv, C)."""
    B, Nq, C = query.shape
    Bk, Nk, Ck = key.shape
    Bv, Nv, Cv = value.shape
    assert B == Bk == Bv and C == Ck == Cv, "batch/channel mismatch"
    assert Nk == Nv, "attn @ v requires matching key/value sequence lengths"
    assert C % num_heads == 0, "dim must be divisible by num_heads"
    hd = C // num_heads
    scale = hd ** (-0.5)

    # --- chip-aware defaults ------------------------------------------------
    kind = _device_kind()
    big_vmem = any(v in kind for v in ("v2", "v3", "v4", "v5", "v6"))  # 128 MiB
    if q_tile is None:
        q_tile = 512 if big_vmem else 256      # conservative on v7x (64 MiB)
    if kv_tile is None:
        kv_tile = 1024 if big_vmem else 512
    if kv_buffers is None:
        kv_buffers = 3 if "v6" in kind else 2  # hide exposed K/V DMA on v6e
    if bf16_exp is None:
        bf16_exp = bool(kind) and not any(v in kind for v in ("v2", "v3", "v4", "v5"))

    # Pad each head to a 128-lane slot so the per-head inner loop never pays
    # masked lane slices (skip for tiny heads where the padding blowup > 2x).
    if hd % 128 == 0:
        hd_pad = hd
    elif hd >= 64:
        hd_pad = _round_up(hd, 128)
    else:
        hd_pad = hd  # TODO(synk): tiny heads keep masked sub-128-lane slices.
    Cp = num_heads * hd_pad

    f32, bf16 = jnp.float32, jnp.bfloat16

    # torch Linear stores (out, in); kernel wants (in, out).  Fold the softmax
    # scale into Wq, re-pack into the padded head layout, cast to bf16.
    wq_t = params["wq"].T.astype(f32) * scale
    wk_t = params["wk"].T.astype(f32)
    wv_t = params["wv"].T.astype(f32)
    wo_t = params["wo"].T.astype(f32)
    wq_p = _pad_head_cols(wq_t, num_heads, hd, hd_pad).astype(bf16)
    wk_p = _pad_head_cols(wk_t, num_heads, hd, hd_pad).astype(bf16)
    wv_p = _pad_head_cols(wv_t, num_heads, hd, hd_pad).astype(bf16)
    wo_p = _pad_head_rows(wo_t, num_heads, hd, hd_pad).astype(bf16)
    bo = params["bo"].reshape(1, C).astype(f32)

    tq = _pick_tile(Nq, q_tile)
    tk = _pick_tile(Nk, kv_tile)
    nq_t = Nq // tq
    nk_t = Nk // tk
    out_itemsize = jnp.dtype(query.dtype).itemsize

    # ---- calls 1-3: Q / K / V projections into the padded head layout ------
    q_proj = _project(query, wq_p, q_tile)
    k_proj = _project(key, wk_p, kv_tile)
    v_proj = _project(value, wv_p, kv_tile)

    # ---- call 4: flash attention + output projection ------------------------
    footprint = (2 * tq * Cp * 2                      # q block, double-buffered
                 + 2 * kv_buffers * tk * Cp * 2       # K + V blocks
                 + Cp * C * 2 + C * 4                 # Wo (single buffer) + bias
                 + 2 * tq * C * out_itemsize          # output block
                 + tq * Cp * 4 + 2 * tq * num_heads * 4   # scratch acc/m/l
                 + 3 * tq * tk * 4)                   # s / exp / p temporaries

    attn_cost = pl.CostEstimate(
        flops=4 * B * Nq * Nk * Cp + 2 * B * Nq * Cp * C,
        transcendentals=B * num_heads * Nq * Nk,
        bytes_accessed=(B * Nq * Cp * 2
                        + nq_t * 2 * B * Nk * Cp * 2   # K/V re-streamed per q-tile
                        + Cp * C * 2 + C * 4
                        + B * Nq * C * out_itemsize))

    kernel = functools.partial(_flash_attn_kernel, num_heads=num_heads,
                               hd_pad=hd_pad, bf16_exp=bf16_exp)

    return pl.pallas_call(
        kernel,
        out_shape=jax.ShapeDtypeStruct((B, Nq, C), query.dtype),
        grid_spec=pltpu.PrefetchScalarGridSpec(
            num_scalar_prefetch=0,
            grid=(B, nq_t, nk_t),
            in_specs=[pl.BlockSpec((1, tq, Cp), lambda b, qi, ki: (b, qi, 0)),
                      pl.BlockSpec((1, tk, Cp), lambda b, qi, ki: (b, ki, 0),
                                   pipeline_mode=pl.Buffered(kv_buffers)),
                      pl.BlockSpec((1, tk, Cp), lambda b, qi, ki: (b, ki, 0),
                                   pipeline_mode=pl.Buffered(kv_buffers)),
                      pl.BlockSpec((Cp, C), lambda b, qi, ki: (0, 0),
                                   pipeline_mode=pl.Buffered(1)),
                      pl.BlockSpec((1, C), lambda b, qi, ki: (0, 0),
                                   pipeline_mode=pl.Buffered(1))],
            out_specs=pl.BlockSpec((1, tq, C), lambda b, qi, ki: (b, qi, 0)),
            scratch_shapes=[pltpu.VMEM((tq, num_heads), f32),   # running max
                            pltpu.VMEM((tq, num_heads), f32),   # running sum
                            pltpu.VMEM((tq, Cp), f32)],         # accumulator
        ),
        compiler_params=pltpu.CompilerParams(
            dimension_semantics=("parallel", "parallel", "arbitrary"),
            vmem_limit_bytes=_vmem_limit(footprint)),
        cost_estimate=attn_cost,
    )(q_proj, k_proj, v_proj, wo_p, bo)


def cross_attention_reference(query, key, value, params, *, num_heads):
    """Pure-JAX f32 reference mirroring the PyTorch forward."""
    B, Nq, C = query.shape
    Nk = key.shape[1]
    Nv = value.shape[1]
    hd = C // num_heads
    scale = hd ** (-0.5)

    q = query @ params["wq"].T
    k = key @ params["wk"].T
    v = value @ params["wv"].T
    q = q.reshape(B, Nq, num_heads, hd).transpose(0, 2, 1, 3)
    k = k.reshape(B, Nk, num_heads, hd).transpose(0, 2, 1, 3)
    v = v.reshape(B, Nv, num_heads, hd).transpose(0, 2, 1, 3)
    attn = (q @ jnp.swapaxes(k, -2, -1)) * scale
    attn = jax.nn.softmax(attn, axis=-1)
    x = (attn @ v).transpose(0, 2, 1, 3).reshape(B, Nq, C)
    return x @ params["wo"].T + params["bo"]


if __name__ == "__main__":
    def make_case(seed, B, Nq, Nk, C):
        ks = jax.random.split(jax.random.PRNGKey(seed), 8)
        query = jax.random.normal(ks[0], (B, Nq, C), dtype=jnp.float32)
        key_in = jax.random.normal(ks[1], (B, Nk, C), dtype=jnp.float32)
        value = jax.random.normal(ks[2], (B, Nk, C), dtype=jnp.float32)
        params = {
            "wq": 0.05 * jax.random.normal(ks[3], (C, C), dtype=jnp.float32),
            "wk": 0.05 * jax.random.normal(ks[4], (C, C), dtype=jnp.float32),
            "wv": 0.05 * jax.random.normal(ks[5], (C, C), dtype=jnp.float32),
            "wo": 0.05 * jax.random.normal(ks[6], (C, C), dtype=jnp.float32),
            "bo": 0.05 * jax.random.normal(ks[7], (C,), dtype=jnp.float32),
        }
        return query, key_in, value, params

    # Case 1: single tile, tiny heads (unpadded lane-slice path).
    q1, k1, v1, p1 = make_case(0, 2, 8, 8, 32)
    out1 = jax.block_until_ready(
        cross_attention_pallas(q1, k1, v1, p1, num_heads=4))
    ref1 = cross_attention_reference(q1, k1, v1, p1, num_heads=4)
    assert out1.shape == (2, 8, 32)
    err1 = float(jnp.max(jnp.abs(out1 - ref1)))
    assert jnp.allclose(out1, ref1, atol=2e-2, rtol=2e-2), \
        f"case1 mismatch vs reference (max abs err {err1})"

    # Case 2: multiple q- and kv-tiles (online softmax across kv tiles) with
    # head_dim=64 -> exercises the padded 128-lane head-slot path.
    q2, k2, v2, p2 = make_case(1, 2, 32, 48, 256)
    out2 = jax.block_until_ready(
        cross_attention_pallas(q2, k2, v2, p2, num_heads=4,
                               q_tile=16, kv_tile=16))
    ref2 = cross_attention_reference(q2, k2, v2, p2, num_heads=4)
    assert out2.shape == (2, 32, 256)
    err2 = float(jnp.max(jnp.abs(out2 - ref2)))
    # bf16 MXU operands (+ bf16 exp on v6e/v7x) -> ~1e-2 level abs error vs f32.
    assert jnp.allclose(out2, ref2, atol=3e-2, rtol=3e-2), \
        f"case2 mismatch vs reference (max abs err {err2})"

    print("KERNEL_OK")
</pallas_src>

<mosaic_0001>
module attributes {stable_mosaic.version = 11 : i64} {
  func.func @_proj_kernel(%arg0: i32, %arg1: i32, %arg2: memref<1x8x32xf32, #tpu.memory_space<vmem>>, %arg3: memref<32x32xbf16, #tpu.memory_space<vmem>>, %arg4: memref<1x8x32xbf16, #tpu.memory_space<vmem>>) attributes {dimension_semantics = [#tpu.dimension_semantics<parallel>, #tpu.dimension_semantics<parallel>], iteration_bounds = array<i64: 2, 1>, scalar_prefetch = 0 : i64, scratch_operands = 0 : i64, tpu.core_type = #tpu.core_type<tc>, window_params = [{transform_indices = @transform_0, window_bounds = array<i64: 1, 8, 32>}, {pipeline_mode = #tpu.pipeline_mode<synchronous>, transform_indices = @transform_1, window_bounds = array<i64: 32, 32>}, {transform_indices = @transform_2, window_bounds = array<i64: 1, 8, 32>}]} {
    %c0 = arith.constant 0 : index
    %c0_0 = arith.constant 0 : index
    %c0_1 = arith.constant 0 : index
    %0 = vector.load %arg2[%c0, %c0_0, %c0_1] : memref<1x8x32xf32, #tpu.memory_space<vmem>>, vector<1x8x32xf32>
    %1 = vector.shape_cast %0 : vector<1x8x32xf32> to vector<8x32xf32>
    %2 = arith.truncf %1 : vector<8x32xf32> to vector<8x32xbf16>
    %c0_2 = arith.constant 0 : index
    %c0_3 = arith.constant 0 : index
    %3 = vector.load %arg3[%c0_2, %c0_3] : memref<32x32xbf16, #tpu.memory_space<vmem>>, vector<32x32xbf16>
    %cst = arith.constant dense<0.000000e+00> : vector<8x32xf32>
    %4 = tpu.matmul %2, %3, %cst {dimension_numbers = #tpu.dot_dimension_numbers<[1], [0], [0], [1], [0, 0, 1, 1], [], []>} : vector<8x32xbf16>, vector<32x32xbf16>, vector<8x32xf32> -> vector<8x32xf32>
    %5 = arith.truncf %4 : vector<8x32xf32> to vector<8x32xbf16>
    %c0_4 = arith.constant 0 : index
    %c0_5 = arith.constant 0 : index
    %c0_6 = arith.constant 0 : index
    %6 = vector.load %arg4[%c0_4, %c0_5, %c0_6] : memref<1x8x32xbf16, #tpu.memory_space<vmem>>, vector<1x8x32xbf16>
    %7 = vector.shape_cast %6 : vector<1x8x32xbf16> to vector<8x32xbf16>
    %8 = vector.shape_cast %5 : vector<8x32xbf16> to vector<1x8x32xbf16>
    tpu.vector_store %arg4[%c0_4, %c0_5, %c0_6], %8 {strides = array<i32>} : memref<1x8x32xbf16, #tpu.memory_space<vmem>>, vector<1x8x32xbf16>,
    return
  }
  func.func @transform_0(%arg0: i32, %arg1: i32) -> (i32, i32, i32) {
    %c0_i32 = arith.constant 0 : i32
    %c0_i32_0 = arith.constant 0 : i32
    return %arg0, %arg1, %c0_i32 : i32, i32, i32
  }
  func.func @transform_1(%arg0: i32, %arg1: i32) -> (i32, i32) {
    %c0_i32 = arith.constant 0 : i32
    %c0_i32_0 = arith.constant 0 : i32
    %c0_i32_1 = arith.constant 0 : i32
    return %c0_i32, %c0_i32_0 : i32, i32
  }
  func.func @transform_2(%arg0: i32, %arg1: i32) -> (i32, i32, i32) {
    %c0_i32 = arith.constant 0 : i32
    %c0_i32_0 = arith.constant 0 : i32
    return %arg0, %arg1, %c0_i32 : i32, i32, i32
  }
}

</mosaic_0001>

<llo_original>
// kernel: tpu_custom_call.1
$region0: #{tpu_custom_call.1}
  #allocation0 [shape = 'u32[]', space=smem, size = 0x4, offset = 0x4, fixed_abs, tag = 'smem constant byte address 0x4 - core index']
  #allocation1 [shape = 'u32[144,128]{1,0:T(1,128)}', space=vmem, size = 0x12000, scoped, tag = 'internal scratch']
  %s0 = inlined_call_operand.hbm [shape: f32[2,8,32], index: 0, kind: input, shape index: {}]
  %s1 = inlined_call_operand.hbm [shape: bf16[32,32], index: 1, kind: input, shape index: {}]
  %s2 = inlined_call_operand.hbm [shape: bf16[2,8,32], index: 2, kind: output, shape index: {}]
  %s3 = sld [smem:[#allocation0]]
  $region49: #{tpu_custom_call.1} parent=0
    _
  %s5 = ssub.s32 1, %s3
  %s6 = scalar_select 0, %s5, %s3
  $region1: #{tpu_custom_call.1} parent=0
    #allocation2 [shape = 'u8[8192]{0}', space=vmem, size = 0x2000, scoped, tag = 'input window, operand 0']
    #allocation3 [shape = 's32[2]{0}', space=sflag, size = 0x8, scoped, tag = 'scoped memory for tpu_custom_call.1']
    #allocation4 [shape = 's32[2]{0}', space=sflag, size = 0x8, scoped, tag = 'scoped memory for tpu_custom_call.1']
    #allocation5 [shape = 'u8[8192]{0}', space=vmem, size = 0x2000, scoped, tag = 'input window, operand 1, single buffered']
    #allocation6 [shape = 's32[1]{0}', space=sflag, size = 0x4, scoped, tag = 'scoped memory for tpu_custom_call.1']
    #allocation7 [shape = 'u8[4096]{0}', space=vmem, size = 0x1000, scoped, tag = 'output window, operand 0']
    %7 = vsyncpa [#allocation3], 0
    %s8 = scalar_lea.sflag [#allocation3], 1
    %9 = vsyncpa %s8, 0
    %10 = vsyncpa [#allocation6], 0
    %11 = vsyncpa [#allocation4], 0
    %s12 = scalar_lea.sflag [#allocation4], 1
    %13 = vsyncpa %s12, 0
    loop: start=0, step=1, limit=4
    $region2: #{tpu_custom_call.1} parent=1 // loop_pre_header
      _
    $region3: #{tpu_custom_call.1} parent=1 // loop_header
      %s15 = sphi 0, %s19
      %p16 = scmp.ge.s32.totalorder %s15, 4
      %s22 = sphi 0, %s34
      %s23 = sphi 0, %s30
      %s24 = sphi 0, %s22
      %s25 = sphi 0, %s23
      %s26 = sphi 0, %s24
      %s27 = sphi 0, %s25
      %s39 = sphi 0, %s41
      %s42 = sphi 0, %s39
      %s43 = sphi 0, %s42
      %s59 = sphi 0, %s43
      %s63 = sphi 0, %s63
      %s65 = sphi 0, %s63
      %s66 = sphi 0, %s65
      %s80 = sphi 0, %s66
      %s88 = sphi 0, %s90
      %s91 = sphi 0, %s88
      %s92 = sphi 0, %s91
      %s108 = sphi 0, %s92
    $region4: #{tpu_custom_call.1} parent=1 // loop_header_branch
      %18 = sbr.rel (%p16) target = $region8
    $region5: #{tpu_custom_call.1} parent=1 // loop_body
      %s20 = ssub.s32 %s15, 1
      %s21 = ssub.s32 %s15, 2
      %s28 = sadd.s32 1, %s23
      %p29 = scmp.ge.s32.totalorder %s28, 1
      %s30 = scalar_select %p29, 0, %s28
      %s31 = sadd.s32 1, %s22
      %s32 = scalar_select %p29, %s31, %s22
      %p33 = scmp.ge.s32.totalorder %s32, 2
      %s34 = scalar_select %p33, 0, %s32
      %s35 = ssub.s32 %s22, %s34
      %s36 = ssub.s32 %s23, %s30
      %s37 = sor.u32 %s35, %s36
      %p38 = scmp.eq.s32.totalorder %s37, 0
      %s40 = sadd.s32 %s39, 1
      %s41 = scalar_select %p38, %s39, %s40
      %p44 = pneg %p38
      %p45 = scmp.eq.s32.totalorder %s15, 1
      %p46 = por %p44, %p45
      %p47 = scmp.ne.s32.totalorder %s39, %s42
      %p48 = scmp.eq.s32.totalorder %s15, 0
      %p49 = por %p47, %p48
      %p50 = scmp.ne.s32.totalorder %s39, %s42
      %p51 = scmp.eq.s32.totalorder %s20, 1
      %p52 = por %p50, %p51
      %p53 = scmp.ne.s32.totalorder %s42, %s43
      %p54 = scmp.eq.s32.totalorder %s20, 0
      %p55 = por %p53, %p54
      %p56 = scmp.ne.s32.totalorder %s42, %s43
      %p57 = scmp.eq.s32.totalorder %s21, 1
      %p58 = por %p56, %p57
      %p60 = scmp.ne.s32.totalorder %s43, %s59
      %p61 = scmp.eq.s32.totalorder %s21, 0
      %p62 = por %p60, %p61
      %s64 = sadd.s32 %s63, 1
      %p67 = scmp.eq.s32.totalorder %s15, 1
      %p68 = scmp.ne.s32.totalorder %s63, %s65
      %p69 = scmp.eq.s32.totalorder %s15, 0
      %p70 = por %p68, %p69
      %p71 = scmp.ne.s32.totalorder %s63, %s65
      %p72 = scmp.eq.s32.totalorder %s20, 1
      %p73 = por %p71, %p72
      %p74 = scmp.ne.s32.totalorder %s65, %s66
      %p75 = scmp.eq.s32.totalorder %s20, 0
      %p76 = por %p74, %p75
      %p77 = scmp.ne.s32.totalorder %s65, %s66
      %p78 = scmp.eq.s32.totalorder %s21, 1
      %p79 = por %p77, %p78
      %p81 = scmp.ne.s32.totalorder %s66, %s80
      %p82 = scmp.eq.s32.totalorder %s21, 0
      %p83 = por %p81, %p82
      %s84 = ssub.s32 %s22, %s34
      %s85 = ssub.s32 %s23, %s30
      %s86 = sor.u32 %s84, %s85
      %p87 = scmp.eq.s32.totalorder %s86, 0
      %s89 = sadd.s32 %s88, 1
      %s90 = scalar_select %p87, %s88, %s89
      %p93 = pneg %p87
      %p94 = scmp.eq.s32.totalorder %s15, 1
      %p95 = por %p93, %p94
      %p96 = scmp.ne.s32.totalorder %s88, %s91
      %p97 = scmp.eq.s32.totalorder %s15, 0
      %p98 = por %p96, %p97
      %p99 = scmp.ne.s32.totalorder %s88, %s91
      %p100 = scmp.eq.s32.totalorder %s20, 1
      %p101 = por %p99, %p100
      %p102 = scmp.ne.s32.totalorder %s91, %s92
      %p103 = scmp.eq.s32.totalorder %s20, 0
      %p104 = por %p102, %p103
      %p105 = scmp.ne.s32.totalorder %s91, %s92
      %p106 = scmp.eq.s32.totalorder %s21, 1
      %p107 = por %p105, %p106
      %p109 = scmp.ne.s32.totalorder %s92, %s108
      %p110 = scmp.eq.s32.totalorder %s21, 0
      %p111 = por %p109, %p110
      %p112 = scmp.le.s32.totalorder 1, %s15
      %p113 = scmp.lt.s32.totalorder %s15, 3
      %p114 = pnand %p112, %p113
      %p115 = pneg %p114
      // Predicated region
      $region9: #{tpu_custom_call.1} parent=5 // pred_check
        _
      $region10: #{tpu_custom_call.1} parent=5 // pred_check_branch
        %117 = sbr.rel (%p114) target = $region12
      $region11: #{tpu_custom_call.1} parent=5 // pred_region
        %s118 = ssub.s32 %s15, 1
        // Predicated region
        $region13: #{tpu_custom_call.1} parent=11 // pred_check
          %p119 = pneg %p76
        $region14: #{tpu_custom_call.1} parent=11 // pred_check_branch
          %121 = sbr.rel (%p119) target = $region16
        $region15: #{tpu_custom_call.1} parent=11 // pred_region
          %s123 = ssub.s32 256, 256
          %124 = vsyncadd [#allocation6], %s123
          %s125 = sshll.u32 [#allocation5], 4
          %s126 = int_to_ptr.vmem [resolvable:$true] %s125
          %131 = dma.hbm_to_vmem [thread:$0]  %s1, 256, %s126, [#allocation6], 64, 64, 4
        $region16: #{tpu_custom_call.1} parent=11 // pred_fallthru
          _
      $region12: #{tpu_custom_call.1} parent=5 // pred_fallthru
        _
      %p132 = scmp.lt.s32.totalorder %s15, 2
      // Predicated region
      $region17: #{tpu_custom_call.1} parent=5 // pred_check
        %p133 = pneg %p132
      $region18: #{tpu_custom_call.1} parent=5 // pred_check_branch
        %135 = sbr.rel (%p133) target = $region20
      $region19: #{tpu_custom_call.1} parent=5 // pred_region
        // Predicated region
        $region21: #{tpu_custom_call.1} parent=19 // pred_check
          %p136 = pneg %p49
        $region22: #{tpu_custom_call.1} parent=19 // pred_check_branch
          %138 = sbr.rel (%p136) target = $region24
        $region23: #{tpu_custom_call.1} parent=19 // pred_region
          %s139 = sand.u32 %s39, 1
          %s140 = scalar_lea.sflag [#allocation3], %s139
          %s141 = sand.u32 %s39, 1
          %s142 = smul.addr %s141, 8
          %s143 = scalar_lea.vmem [#allocation2], %s142
          %s145 = ssub.s32 128, 128
          %146 = vsyncadd %s140, %s145
          %s147 = sadd.s32 %s23, %s22
          %s148 = smul.addr %s147, 128
          %s149 = scalar_lea.hbm %s0, %s148
          %s151 = sshll.u32 %s143, 4
          %s152 = int_to_ptr.vmem [resolvable:$true] %s151
          %154 = dma.hbm_to_vmem [thread:$0]  %s149, 128, %s152, %s140
        $region24: #{tpu_custom_call.1} parent=19 // pred_fallthru
          _
      $region20: #{tpu_custom_call.1} parent=5 // pred_fallthru
        _
      %p155 = scmp.le.s32.totalorder 1, %s15
      %p156 = scmp.lt.s32.totalorder %s15, 3
      %p157 = pnand %p155, %p156
      %p158 = pneg %p157
      // Predicated region
      $region25: #{tpu_custom_call.1} parent=5 // pred_check
        _
      $region26: #{tpu_custom_call.1} parent=5 // pred_check_branch
        %160 = sbr.rel (%p157) target = $region28
      $region27: #{tpu_custom_call.1} parent=5 // pred_region
        %s161 = ssub.s32 %s15, 1
        %s162 = sand.u32 %s42, 1
        %s163 = scalar_lea.sflag [#allocation3], %s162
        %s164 = sand.u32 %s42, 1
        %s165 = smul.addr %s164, 8
        %s166 = scalar_lea.vmem [#allocation2], %s165
        // Predicated region
        $region29: #{tpu_custom_call.1} parent=27 // pred_check
          %p167 = pneg %p55
        $region30: #{tpu_custom_call.1} parent=27 // pred_check_branch
          %169 = sbr.rel (%p167) target = $region32
        $region31: #{tpu_custom_call.1} parent=27 // pred_region
          %170 = dma.done %s163, 128
        $region32: #{tpu_custom_call.1} parent=27 // pred_fallthru
          _
        // Predicated region
        $region33: #{tpu_custom_call.1} parent=27 // pred_check
          %p171 = pneg %p76
        $region34: #{tpu_custom_call.1} parent=27 // pred_check_branch
          %173 = sbr.rel (%p171) target = $region36
        $region35: #{tpu_custom_call.1} parent=27 // pred_region
          %174 = dma.done [#allocation6], 256
        $region36: #{tpu_custom_call.1} parent=27 // pred_fallthru
          _
        %s175 = sand.u32 %s42, 1
        %s176 = scalar_lea.sflag [#allocation3], %s175
        %s177 = sand.u32 %s42, 1
        %s178 = smul.addr %s177, 8
        %s179 = scalar_lea.vmem [#allocation2], %s178
        %p180 = pneg %p55
        %p181 = pneg %p52
        %p182 = pneg %p76
        %p183 = pneg %p73
        %p184 = pneg %p104
        %p185 = pneg %p101
        %s186 = sand.u32 %s91, 1
        %s187 = scalar_lea.sflag [#allocation4], %s186
        %s188 = sand.u32 %s91, 1
        %s189 = smul.addr %s188, 4
        %s190 = scalar_lea.vmem [#allocation7], %s189
        %v192 = vld [vmem:[%s166] sm:$0xff]
        %v193 = vpack.c.bf16 %v192, %v192
        %v194 = vld [vmem:[#allocation5] sm:$0xf]
        %v195 = vld [vmem:[#allocation5 + $0x4] sm:$0xf]
        %v196 = vld [vmem:[#allocation5 + $0x8] sm:$0xf]
        %v197 = vld [vmem:[#allocation5 + $0xc] sm:$0xf]
        %v202 = vunpack.c.l.b16 %v194
        %v203 = vunpack.c.l.b16 %v195
        %v204 = vunpack.c.l.b16 %v196
        %v205 = vunpack.c.l.b16 %v197
        %v206 = vpack.c.b16 %v203, %v202
        %v207 = vpack.c.b16 %v205, %v204
        %vm210 = vcmask 261120
        %v212 = vsel %vm210, %v193, 0
        %214 = vmatprep.subr.bf16.mxu0 0
        %215 = vmatpush1.bf16.msra.mxu0 %v206
        %216 = vmatprep.subr.bf16.mxu0 0
        %217 = vmatpush1.bf16.msra.mxu0 %v207
        %218 = vmatprep.subr.bf16.mxu0 0
        %219 = vmatpush1.bf16.msra.mxu0 0
        %220 = vmatprep.subr.bf16.mxu0 0
        %221 = vmatpush1.bf16.msra.mxu0 0
        %222 = vmatprep.subr.bf16.mxu0 0
        %223 = vmatpush1.bf16.msra.mxu0 0
        %224 = vmatprep.subr.bf16.mxu0 0
        %225 = vmatpush1.bf16.msra.mxu0 0
        %226 = vmatprep.subr.bf16.mxu0 0
        %227 = vmatpush1.bf16.msra.mxu0 0
        %228 = vmatprep.subr.bf16.mxu0 0
        %229 = vmatpush1.bf16.msra.mxu0 0
        %230 = vmatprep.subr.bf16.mxu0 0
        %231 = vmatpush1.bf16.msra.mxu0 0
        %232 = vmatprep.subr.bf16.mxu0 0
        %233 = vmatpush1.bf16.msra.mxu0 0
        %234 = vmatprep.subr.bf16.mxu0 0
        %235 = vmatpush1.bf16.msra.mxu0 0
        %236 = vmatprep.subr.bf16.mxu0 0
        %237 = vmatpush1.bf16.msra.mxu0 0
        %238 = vmatprep.subr.bf16.mxu0 0
        %239 = vmatpush1.bf16.msra.mxu0 0
        %240 = vmatprep.subr.bf16.mxu0 0
        %241 = vmatpush1.bf16.msra.mxu0 0
        %242 = vmatprep.subr.bf16.mxu0 0
        %243 = vmatpush1.bf16.msra.mxu0 0
        %244 = vmatprep.subr.bf16.mxu0 0
        %245 = vmatpush1.bf16.msra.mxu0 0
        %246 = vmatprep.mubr.bf16.mxu0 0
        %247 = vmatmul.mubr.bf16.gmra.mrb[0].mxu0 %v212
        %v248 = vpop.f32.mrb[0].mxu0
        %v249 = vadd.f32 0.0, %v248
        %v250 = vpop.f32.mrb[0].mxu0
        %v251 = vpop.f32.mrb[0].mxu0
        %v252 = vpop.f32.mrb[0].mxu0
        %253 = vdwg.mxu0
        %v254 = vpack.c.bf16 %v249, %v249
        %vm255 = vcmask 257024
        %256 = vst.msk [vmem:[%s190] sm:$0xf] %vm255, %v254
        %s257 = sand.u32 %s91, 1
        %s258 = scalar_lea.sflag [#allocation4], %s257
        %s259 = sand.u32 %s91, 1
        %s260 = smul.addr %s259, 4
        %s261 = scalar_lea.vmem [#allocation7], %s260
        // Predicated region
        $region37: #{tpu_custom_call.1} parent=27 // pred_check
          %p262 = pneg %p101
        $region38: #{tpu_custom_call.1} parent=27 // pred_check_branch
          %264 = sbr.rel (%p262) target = $region40
        $region39: #{tpu_custom_call.1} parent=27 // pred_region
          %s266 = ssub.s32 64, 64
          %267 = vsyncadd %s258, %s266
          %s268 = sadd.s32 %s25, %s24
          %s269 = smul.addr %s268, 64
          %s270 = scalar_lea.hbm %s2, %s269
          %s272 = sshll.u32 %s261, 4
          %s273 = int_to_ptr.vmem [resolvable:$true] %s272
          %275 = dma.vmem_to_hbm [thread:$0]  %s273, 64, %s270, %s258
        $region40: #{tpu_custom_call.1} parent=27 // pred_fallthru
          _
      $region28: #{tpu_custom_call.1} parent=5 // pred_fallthru
        _
      %p276 = scmp.le.s32.totalorder 2, %s15
      // Predicated region
      $region41: #{tpu_custom_call.1} parent=5 // pred_check
        %p277 = pneg %p276
      $region42: #{tpu_custom_call.1} parent=5 // pred_check_branch
        %279 = sbr.rel (%p277) target = $region44
      $region43: #{tpu_custom_call.1} parent=5 // pred_region
        %s280 = ssub.s32 %s15, 2
        // Predicated region
        $region45: #{tpu_custom_call.1} parent=43 // pred_check
          %p281 = pneg %p107
        $region46: #{tpu_custom_call.1} parent=43 // pred_check_branch
          %283 = sbr.rel (%p281) target = $region48
        $region47: #{tpu_custom_call.1} parent=43 // pred_region
          %s284 = sand.u32 %s92, 1
          %s285 = scalar_lea.sflag [#allocation4], %s284
          %s286 = sand.u32 %s92, 1
          %s287 = smul.addr %s286, 4
          %s288 = scalar_lea.vmem [#allocation7], %s287
          %289 = dma.done %s285, 64
        $region48: #{tpu_custom_call.1} parent=43 // pred_fallthru
          _
      $region44: #{tpu_custom_call.1} parent=5 // pred_fallthru
        _
    $region6: #{tpu_custom_call.1} parent=1 // loop_footer
      %s19 = sadd.s32 1, %s15
    $region7: #{tpu_custom_call.1} parent=1 // loop_footer_branch
      %14 = sbr.rel target = $region3
    $region8: #{tpu_custom_call.1} parent=1 // loop_exit
      _
    %290 = vsyncpa [#allocation3], 1
    %s291 = scalar_lea.sflag [#allocation3], 1
    %292 = vsyncpa %s291, 1
    %293 = vsyncpa [#allocation6], 1
    %294 = vsyncpa [#allocation4], 1
    %s295 = scalar_lea.sflag [#allocation4], 1
    %296 = vsyncpa %s295, 1

</llo_original>
